<compile_context>
chip_gen: v5e
topology: v5e:2x2
jax: 0.10.0
libtpu: 0.0.40
codegen_flags: <defaults>
</compile_context>

<pallas_src>
import math
from functools import partial

import jax
import jax.numpy as jnp
from jax import lax
from jax.experimental import pallas as pl
from jax.experimental.pallas import tpu as pltpu


# ----------------------- random feature projection (init-time) -----------------------

def default(val, d):
    return val if val is not None else d


def _orthogonal_matrix_chunk(key, cols):
    unstructured = jax.random.normal(key, (cols, cols), dtype=jnp.float32)
    q, _ = jnp.linalg.qr(unstructured)
    return q.T


def gaussian_orthogonal_random_matrix(key, nb_rows, nb_columns, scaling=0):
    nb_full_blocks = nb_rows // nb_columns
    keys = jax.random.split(key, nb_full_blocks + 2)
    blocks = [_orthogonal_matrix_chunk(keys[i], nb_columns)
              for i in range(nb_full_blocks)]
    remaining = nb_rows - nb_full_blocks * nb_columns
    if remaining > 0:
        blocks.append(_orthogonal_matrix_chunk(keys[nb_full_blocks], nb_columns)[:remaining])
    final = jnp.concatenate(blocks, axis=0)
    if scaling == 0:
        multiplier = jnp.linalg.norm(
            jax.random.normal(keys[-1], (nb_rows, nb_columns), dtype=jnp.float32), axis=1)
    elif scaling == 1:
        multiplier = jnp.full((nb_rows,), math.sqrt(float(nb_columns)), dtype=jnp.float32)
    else:
        raise ValueError(f"Invalid scaling {scaling}")
    return multiplier[:, None] * final


# ------------------------ pass 1: global max of key feature logits -------------------

def _k_max_kernel(k_ref, pt_ref, mx_ref):
    # k: (hb, N, D); pt: (D, M) pre-scaled bf16 projection; mx: (1, 1) running global max.
    @pl.when(pl.program_id(0) == 0)
    def _():
        mx_ref[...] = jnp.full_like(mx_ref, -jnp.inf)

    hb, n, d = k_ref.shape
    k2 = k_ref[...].reshape(hb * n, d)
    kd = jnp.dot(k2.astype(jnp.bfloat16), pt_ref[...],
                 preferred_element_type=jnp.float32)                      # (hb*N, M)
    tile_max = jnp.max(jnp.max(kd, axis=-1, keepdims=True), axis=0, keepdims=True)
    mx_ref[...] = jnp.maximum(mx_ref[...], tile_max)


def _k_feature_global_max(k3, proj_t_bf, hb):
    bh, n, d = k3.shape
    m = proj_t_bf.shape[1]
    return pl.pallas_call(
        _k_max_kernel,
        out_shape=jax.ShapeDtypeStruct((1, 1), jnp.float32),
        grid_spec=pltpu.PrefetchScalarGridSpec(
            num_scalar_prefetch=0,
            grid=(bh // hb,),
            in_specs=[
                pl.BlockSpec((hb, n, d), lambda i: (i, 0, 0)),
                pl.BlockSpec((d, m), lambda i: (0, 0)),
            ],
            out_specs=pl.BlockSpec((1, 1), lambda i: (0, 0)),
        ),
        compiler_params=pltpu.CompilerParams(dimension_semantics=("arbitrary",)),
    )(k3, proj_t_bf)


# --------------------- pass 2: fused FAVOR+ features + linear attention --------------

def _fast_attn_kernel(q_ref, k_ref, v_ref, pt_ref, kmax_ref, o_ref, *,
                      ratio, half_c2, eps):
    hb, n, d = q_ref.shape

    q2 = q_ref[...].reshape(hb * n, d)                          # f32
    k2 = k_ref[...].reshape(hb * n, d)
    pt_bf = pt_ref[...]                                         # (D, M) bf16, = (d**-0.25 * P)^T
    v_bf = v_ref[...].astype(jnp.bfloat16)                      # (hb, N, D) one cast, reused

    # Random-feature logits for every head in the block: one big MXU matmul each
    # (bf16 in, f32 accumulation; hb*N rows keep the systolic array busy).
    qd = jnp.dot(q2.astype(jnp.bfloat16), pt_bf, preferred_element_type=jnp.float32)
    kd = jnp.dot(k2.astype(jnp.bfloat16), pt_bf, preferred_element_type=jnp.float32)

    diag_q = half_c2 * jnp.sum(q2 * q2, axis=-1, keepdims=True)  # (hb*N, 1), f32
    diag_k = half_c2 * jnp.sum(k2 * k2, axis=-1, keepdims=True)
    k_max = kmax_ref[...]                                        # (1, 1) global key max

    q_feat = ratio * (jnp.exp(qd - diag_q - jnp.max(qd, axis=-1, keepdims=True)) + eps)
    k_feat = ratio * (jnp.exp(kd - diag_k - k_max) + eps)        # (hb*N, M), f32

    q_feat = q_feat.reshape(hb, n, -1)                           # sublane-aligned split
    k_feat = k_feat.reshape(hb, n, -1)

    # Linear attention per head (hb is a small compile-time constant; unrolled 2-D
    # MXU ops -- no (N, N) score matrix is ever formed).
    for hh in range(hb):
        qf = q_feat[hh]                                          # (N, M) f32
        kf = k_feat[hh]
        v_h = v_bf[hh]                                           # (N, D) bf16

        k_sum = jnp.sum(kf, axis=0, keepdims=True)               # (1, M)
        denom = jnp.sum(qf * k_sum, axis=-1, keepdims=True)      # (N, 1) > 0
        d_inv = pl.reciprocal(denom, approx=True)                # EUP, frees the VPU

        # context = phi(k)^T @ v : contract the seq axis directly (no explicit
        # in-VMEM transpose of kf).
        ctx = lax.dot_general(kf.astype(jnp.bfloat16), v_h,
                              dimension_numbers=(((0,), (0,)), ((), ())),
                              preferred_element_type=jnp.float32)    # (M, D)
        out_h = jnp.dot(qf.astype(jnp.bfloat16), ctx.astype(jnp.bfloat16),
                        preferred_element_type=jnp.float32)          # (N, D)
        o_ref[hh] = (out_h * d_inv).astype(o_ref.dtype)


def _fast_attention_call(q3, k3, v3, proj_t_bf, k_max, *, ratio, half_c2, eps, hb):
    bh, n, d = q3.shape
    m = proj_t_bf.shape[1]
    kernel = partial(_fast_attn_kernel, ratio=ratio, half_c2=half_c2, eps=eps)
    return pl.pallas_call(
        kernel,
        out_shape=jax.ShapeDtypeStruct((bh, n, d), q3.dtype),
        grid_spec=pltpu.PrefetchScalarGridSpec(
            num_scalar_prefetch=0,
            grid=(bh // hb,),
            in_specs=[
                pl.BlockSpec((hb, n, d), lambda i: (i, 0, 0)),   # q
                pl.BlockSpec((hb, n, d), lambda i: (i, 0, 0)),   # k
                pl.BlockSpec((hb, n, d), lambda i: (i, 0, 0)),   # v
                pl.BlockSpec((d, m), lambda i: (0, 0)),          # scaled bf16 P^T (resident)
                pl.BlockSpec((1, 1), lambda i: (0, 0)),          # global key-logit max
            ],
            out_specs=pl.BlockSpec((hb, n, d), lambda i: (i, 0, 0)),
        ),
        compiler_params=pltpu.CompilerParams(dimension_semantics=("parallel",)),
    )(q3, k3, v3, proj_t_bf, k_max)


# ----------------------------------- module wrapper -----------------------------------

class FastAttentionPallas:
    """Performer FastAttention (non-causal softmax-kernel path) on Pallas TPU."""

    def __init__(self, dim_heads, nb_features=None, ortho_scaling=0, causal=False,
                 generalized_attention=False, no_projection=False, *,
                 key, block_heads=4):
        if causal:
            raise NotImplementedError  # matches the torch module
        # TODO(synk): generalized_attention / no_projection branches not implemented
        #             (only the reference module's default path is exercised here).
        assert not generalized_attention and not no_projection

        nb_features = default(nb_features, int(dim_heads * math.log(dim_heads)))
        self.dim_heads = dim_heads
        self.nb_features = nb_features
        self.ortho_scaling = ortho_scaling
        self.eps = 1e-4
        self.block_heads = block_heads

        self.projection_matrix = gaussian_orthogonal_random_matrix(
            key, nb_features, dim_heads, scaling=ortho_scaling)           # (M, D)

        # Fold data_normalizer (d**-1/4) into the projection, pre-transpose and pre-cast
        # to bf16 once at init time (removes a per-call transpose, an in-kernel VPU
        # multiply and a per-grid-step bf16 cast).
        self.data_normalizer = float(dim_heads) ** -0.25
        self.ratio = float(nb_features) ** -0.5
        self.half_c2 = 0.5 * self.data_normalizer ** 2
        self.proj_t_bf = ((self.projection_matrix * self.data_normalizer).T
                          ).astype(jnp.bfloat16)                          # (D, M), bf16

    def _pick_block_heads(self, bh):
        hb = min(self.block_heads, bh)
        while bh % hb:
            hb -= 1
        return hb

    def __call__(self, q, k, v, key_padding_mask=None):
        # q, k, v: (batch, heads, seq, dim_heads)
        assert key_padding_mask is None  # TODO(synk): key_padding_mask not implemented
        b, h, n, d = q.shape
        assert d == self.dim_heads
        bh = b * h
        hb = self._pick_block_heads(bh)

        # Free reshapes (merge leading dims) -- no host-side transposes.
        q3 = q.reshape(bh, n, d)
        k3 = k.reshape(bh, n, d)
        v3 = v.reshape(bh, n, d)

        # Pass 1: global max of the key feature logits (reference semantics take the
        # max over the whole (b, h, n, m) tensor for keys).
        k_max = _k_feature_global_max(k3, self.proj_t_bf, hb)             # (1, 1) f32

        # Pass 2: fused FAVOR+ features + linear attention.
        out3 = _fast_attention_call(
            q3, k3, v3, self.proj_t_bf, k_max,
            ratio=self.ratio, half_c2=self.half_c2, eps=self.eps, hb=hb)
        return out3.reshape(b, h, n, d)


# -------------------------------------- reference -------------------------------------

def ref_fast_attention(q, k, v, projection_matrix, *, eps=1e-4):
    """Pure-JAX mirror of torch FastAttention.forward (same bf16 casts at the matmul
    boundaries as the kernel, so the comparison is tight)."""
    d = q.shape[-1]
    m = projection_matrix.shape[0]
    c = float(d) ** -0.25
    ratio = float(m) ** -0.5
    pt_bf = ((projection_matrix * c).T).astype(jnp.bfloat16)              # (D, M)

    def logits_and_diag(x):
        xd = jnp.einsum("bhnd,dm->bhnm", x.astype(jnp.bfloat16), pt_bf,
                        preferred_element_type=jnp.float32)
        diag = 0.5 * (c ** 2) * jnp.sum(x * x, axis=-1, keepdims=True)
        return xd, diag

    qd, diag_q = logits_and_diag(q)
    kd, diag_k = logits_and_diag(k)
    q_feat = ratio * (jnp.exp(qd - diag_q - jnp.max(qd, axis=-1, keepdims=True)) + eps)
    k_feat = ratio * (jnp.exp(kd - diag_k - jnp.max(kd)) + eps)

    k_sum = jnp.sum(k_feat, axis=2)                                       # (b, h, M)
    denom = jnp.einsum("bhnm,bhm->bhn", q_feat, k_sum)
    ctx = jnp.einsum("bhnm,bhnd->bhmd", k_feat.astype(jnp.bfloat16),
                     v.astype(jnp.bfloat16), preferred_element_type=jnp.float32)
    out = jnp.einsum("bhnm,bhmd->bhnd", q_feat.astype(jnp.bfloat16),
                     ctx.astype(jnp.bfloat16), preferred_element_type=jnp.float32)
    return out / denom[..., None]


# ----------------------------------------- main ----------------------------------------

if __name__ == "__main__":
    key = jax.random.PRNGKey(0)
    k_proj, kq, kk, kv = jax.random.split(key, 4)

    batch, heads, seq, dim_heads = 2, 4, 16, 32
    fa = FastAttentionPallas(dim_heads, key=k_proj)   # nb_features default = int(32*ln32) = 110

    q = jax.random.normal(kq, (batch, heads, seq, dim_heads), dtype=jnp.float32)
    k = jax.random.normal(kk, (batch, heads, seq, dim_heads), dtype=jnp.float32)
    v = jax.random.normal(kv, (batch, heads, seq, dim_heads), dtype=jnp.float32)

    out = fa(q, k, v)
    out = jax.block_until_ready(out)
    assert out.shape == (batch, heads, seq, dim_heads)

    ref = ref_fast_attention(q, k, v, fa.projection_matrix)
    max_err = float(jnp.max(jnp.abs(out - ref)))
    # bf16 MXU operands + approx reciprocal -> modestly loosened tolerances.
    assert jnp.allclose(out, ref, atol=2e-2, rtol=2e-2), f"max abs err {max_err}"

    print("KERNEL_OK")
</pallas_src>

<mosaic_0001>
module attributes {stable_mosaic.version = 11 : i64} {
  func.func @_k_max_kernel(%arg0: i32, %arg1: memref<4x16x32xf32, #tpu.memory_space<vmem>>, %arg2: memref<32x110xbf16, #tpu.memory_space<vmem>>, %arg3: memref<1x1xf32, #tpu.memory_space<vmem>>) attributes {dimension_semantics = [#tpu.dimension_semantics<arbitrary>], iteration_bounds = array<i64: 2>, scalar_prefetch = 0 : i64, scratch_operands = 0 : i64, tpu.core_type = #tpu.core_type<tc>, window_params = [{transform_indices = @transform_0, window_bounds = array<i64: 4, 16, 32>}, {pipeline_mode = #tpu.pipeline_mode<synchronous>, transform_indices = @transform_1, window_bounds = array<i64: 32, 110>}, {pipeline_mode = #tpu.pipeline_mode<synchronous>, transform_indices = @transform_2, window_bounds = array<i64: 1, 1>}]} {
    %c0_i32 = arith.constant 0 : i32
    %0 = arith.cmpi eq, %arg0, %c0_i32 : i32
    %1 = arith.extui %0 : i1 to i32
    %c0_i32_0 = arith.constant 0 : i32
    %2 = arith.cmpi ne, %1, %c0_i32_0 : i32
    scf.if %2 {
      %cst_11 = arith.constant 0xFF800000 : f32
      %15 = vector.broadcast %cst_11 : f32 to vector<1x1xf32>
      %c0_12 = arith.constant 0 : index
      %c0_13 = arith.constant 0 : index
      %16 = vector.load %arg3[%c0_12, %c0_13] : memref<1x1xf32, #tpu.memory_space<vmem>>, vector<1x1xf32>
      tpu.vector_store %arg3[%c0_12, %c0_13], %15 {strides = array<i32>} : memref<1x1xf32, #tpu.memory_space<vmem>>, vector<1x1xf32>,
    } else {
    }
    %c0 = arith.constant 0 : index
    %c0_1 = arith.constant 0 : index
    %c0_2 = arith.constant 0 : index
    %3 = vector.load %arg1[%c0, %c0_1, %c0_2] : memref<4x16x32xf32, #tpu.memory_space<vmem>>, vector<4x16x32xf32>
    %4 = vector.shape_cast %3 : vector<4x16x32xf32> to vector<64x32xf32>
    %5 = arith.truncf %4 : vector<64x32xf32> to vector<64x32xbf16>
    %c0_3 = arith.constant 0 : index
    %c0_4 = arith.constant 0 : index
    %6 = vector.load %arg2[%c0_3, %c0_4] : memref<32x110xbf16, #tpu.memory_space<vmem>>, vector<32x110xbf16>
    %cst = arith.constant dense<0.000000e+00> : vector<64x110xf32>
    %7 = tpu.matmul %5, %6, %cst {dimension_numbers = #tpu.dot_dimension_numbers<[1], [0], [0], [1], [0, 0, 1, 1], [], []>} : vector<64x32xbf16>, vector<32x110xbf16>, vector<64x110xf32> -> vector<64x110xf32>
    %cst_5 = arith.constant dense<0xFF800000> : vector<64xf32>
    %8 = vector.multi_reduction <maximumf>, %7, %cst_5 [1] : vector<64x110xf32> to vector<64xf32>
    %9 = vector.shape_cast %8 : vector<64xf32> to vector<64x1xf32>
    %cst_6 = arith.constant dense<0xFF800000> : vector<1xf32>
    %10 = vector.multi_reduction <maximumf>, %9, %cst_6 [0] : vector<64x1xf32> to vector<1xf32>
    %11 = vector.shape_cast %10 : vector<1xf32> to vector<1x1xf32>
    %c0_7 = arith.constant 0 : index
    %c0_8 = arith.constant 0 : index
    %12 = vector.load %arg3[%c0_7, %c0_8] : memref<1x1xf32, #tpu.memory_space<vmem>>, vector<1x1xf32>
    %13 = arith.maximumf %12, %11 : vector<1x1xf32>
    %c0_9 = arith.constant 0 : index
    %c0_10 = arith.constant 0 : index
    %14 = vector.load %arg3[%c0_9, %c0_10] : memref<1x1xf32, #tpu.memory_space<vmem>>, vector<1x1xf32>
    tpu.vector_store %arg3[%c0_9, %c0_10], %13 {strides = array<i32>} : memref<1x1xf32, #tpu.memory_space<vmem>>, vector<1x1xf32>,
    return
  }
  func.func @transform_0(%arg0: i32) -> (i32, i32, i32) {
    %c0_i32 = arith.constant 0 : i32
    %c0_i32_0 = arith.constant 0 : i32
    %c0_i32_1 = arith.constant 0 : i32
    return %arg0, %c0_i32, %c0_i32_0 : i32, i32, i32
  }
  func.func @transform_1(%arg0: i32) -> (i32, i32) {
    %c0_i32 = arith.constant 0 : i32
    %c0_i32_0 = arith.constant 0 : i32
    %c0_i32_1 = arith.constant 0 : i32
    return %c0_i32, %c0_i32_0 : i32, i32
  }
  func.func @transform_2(%arg0: i32) -> (i32, i32) {
    %c0_i32 = arith.constant 0 : i32
    %c0_i32_0 = arith.constant 0 : i32
    %c0_i32_1 = arith.constant 0 : i32
    return %c0_i32, %c0_i32_0 : i32, i32
  }
}

</mosaic_0001>

<llo_original>
// kernel: tpu_custom_call.1
$region0: #{tpu_custom_call.1}
  #allocation0 [shape = 'u32[]', space=smem, size = 0x4, offset = 0x4, fixed_abs, tag = 'smem constant byte address 0x4 - core index']
  #allocation1 [shape = 'u32[72,128]{1,0:T(1,128)}', space=vmem, size = 0x9000, scoped, tag = 'internal scratch']
  %s0 = inlined_call_operand.hbm [shape: f32[8,16,32], index: 0, kind: input, shape index: {}]
  %s1 = inlined_call_operand.hbm [shape: bf16[32,110], index: 1, kind: input, shape index: {}]
  %s2 = inlined_call_operand.hbm [shape: f32[1,1], index: 2, kind: output, shape index: {}]
  %s3 = sld [smem:[#allocation0]]
  $region53: #{tpu_custom_call.1} parent=0
    _
  %s5 = ssub.s32 1, %s3
  %s6 = scalar_select 0, %s5, %s3
  $region1: #{tpu_custom_call.1} parent=0
    #allocation2 [shape = 'u8[65536]{0}', space=vmem, size = 0x10000, scoped, tag = 'input window, operand 0']
    #allocation3 [shape = 's32[2]{0}', space=sflag, size = 0x8, scoped, tag = 'scoped memory for tpu_custom_call.1']
    #allocation4 [shape = 's32[2]{0}', space=sflag, size = 0x8, scoped, tag = 'scoped memory for tpu_custom_call.1']
    #allocation5 [shape = 'u8[8192]{0}', space=vmem, size = 0x2000, scoped, tag = 'input window, operand 1, single buffered']
    #allocation6 [shape = 's32[1]{0}', space=sflag, size = 0x4, scoped, tag = 'scoped memory for tpu_custom_call.1']
    #allocation7 [shape = 'u8[512]{0}', space=vmem, size = 0x400, scoped, tag = 'output window, operand 0, single buffered']
    %7 = vsyncpa [#allocation3], 0
    %s8 = scalar_lea.sflag [#allocation3], 1
    %9 = vsyncpa %s8, 0
    %10 = vsyncpa [#allocation6], 0
    %11 = vsyncpa [#allocation4], 0
    loop: start=0, step=1, limit=4
    $region2: #{tpu_custom_call.1} parent=1 // loop_pre_header
      _
    $region3: #{tpu_custom_call.1} parent=1 // loop_header
      %s13 = sphi 0, %s17
      %p14 = scmp.ge.s32.totalorder %s13, 4
      %s23 = sphi 0, %s25
      %s26 = sphi 0, %s23
      %s27 = sphi 0, %s26
      %s43 = sphi 0, %s27
      %s47 = sphi 0, %s47
      %s49 = sphi 0, %s47
      %s50 = sphi 0, %s49
      %s64 = sphi 0, %s50
      %s68 = sphi 0, %s68
      %s70 = sphi 0, %s68
      %s71 = sphi 0, %s70
      %s85 = sphi 0, %s71
    $region4: #{tpu_custom_call.1} parent=1 // loop_header_branch
      %16 = sbr.rel (%p14) target = $region8
    $region5: #{tpu_custom_call.1} parent=1 // loop_body
      %s18 = ssub.s32 %s13, 1
      %s19 = ssub.s32 %s13, 2
      %s20 = sadd.s32 %s13, 1
      %s21 = ssub.s32 %s13, %s20
      %p22 = scmp.eq.s32.totalorder %s21, 0
      %s24 = sadd.s32 %s23, 1
      %s25 = scalar_select %p22, %s23, %s24
      %p28 = pneg %p22
      %p29 = scmp.eq.s32.totalorder %s13, 1
      %p30 = por %p28, %p29
      %p31 = scmp.ne.s32.totalorder %s23, %s26
      %p32 = scmp.eq.s32.totalorder %s13, 0
      %p33 = por %p31, %p32
      %p34 = scmp.ne.s32.totalorder %s23, %s26
      %p35 = scmp.eq.s32.totalorder %s18, 1
      %p36 = por %p34, %p35
      %p37 = scmp.ne.s32.totalorder %s26, %s27
      %p38 = scmp.eq.s32.totalorder %s18, 0
      %p39 = por %p37, %p38
      %p40 = scmp.ne.s32.totalorder %s26, %s27
      %p41 = scmp.eq.s32.totalorder %s19, 1
      %p42 = por %p40, %p41
      %p44 = scmp.ne.s32.totalorder %s27, %s43
      %p45 = scmp.eq.s32.totalorder %s19, 0
      %p46 = por %p44, %p45
      %s48 = sadd.s32 %s47, 1
      %p51 = scmp.eq.s32.totalorder %s13, 1
      %p52 = scmp.ne.s32.totalorder %s47, %s49
      %p53 = scmp.eq.s32.totalorder %s13, 0
      %p54 = por %p52, %p53
      %p55 = scmp.ne.s32.totalorder %s47, %s49
      %p56 = scmp.eq.s32.totalorder %s18, 1
      %p57 = por %p55, %p56
      %p58 = scmp.ne.s32.totalorder %s49, %s50
      %p59 = scmp.eq.s32.totalorder %s18, 0
      %p60 = por %p58, %p59
      %p61 = scmp.ne.s32.totalorder %s49, %s50
      %p62 = scmp.eq.s32.totalorder %s19, 1
      %p63 = por %p61, %p62
      %p65 = scmp.ne.s32.totalorder %s50, %s64
      %p66 = scmp.eq.s32.totalorder %s19, 0
      %p67 = por %p65, %p66
      %s69 = sadd.s32 %s68, 1
      %p72 = scmp.eq.s32.totalorder %s13, 1
      %p73 = scmp.ne.s32.totalorder %s68, %s70
      %p74 = scmp.eq.s32.totalorder %s13, 0
      %p75 = por %p73, %p74
      %p76 = scmp.ne.s32.totalorder %s68, %s70
      %p77 = scmp.eq.s32.totalorder %s18, 1
      %p78 = por %p76, %p77
      %p79 = scmp.ne.s32.totalorder %s70, %s71
      %p80 = scmp.eq.s32.totalorder %s18, 0
      %p81 = por %p79, %p80
      %p82 = scmp.ne.s32.totalorder %s70, %s71
      %p83 = scmp.eq.s32.totalorder %s19, 1
      %p84 = por %p82, %p83
      %p86 = scmp.ne.s32.totalorder %s71, %s85
      %p87 = scmp.eq.s32.totalorder %s19, 0
      %p88 = por %p86, %p87
      %p89 = scmp.le.s32.totalorder 1, %s13
      %p90 = scmp.lt.s32.totalorder %s13, 3
      %p91 = pnand %p89, %p90
      %p92 = pneg %p91
      // Predicated region
      $region9: #{tpu_custom_call.1} parent=5 // pred_check
        _
      $region10: #{tpu_custom_call.1} parent=5 // pred_check_branch
        %94 = sbr.rel (%p91) target = $region12
      $region11: #{tpu_custom_call.1} parent=5 // pred_region
        %s95 = ssub.s32 %s13, 1
        // Predicated region
        $region13: #{tpu_custom_call.1} parent=11 // pred_check
          %p96 = pneg %p60
        $region14: #{tpu_custom_call.1} parent=11 // pred_check_branch
          %98 = sbr.rel (%p96) target = $region16
        $region15: #{tpu_custom_call.1} parent=11 // pred_region
          %100 = vsyncadd [#allocation6], 0
          %s101 = sshll.u32 %s1, 4
          %s102 = int_to_ptr.hbm [resolvable:$true] %s101
          %s103 = sshll.u32 [#allocation5], 4
          %s104 = int_to_ptr.vmem [resolvable:$true] %s103
          %109 = dma.hbm_to_vmem [thread:$0]  %s102, 256, %s104, [#allocation6], 64, 64, 4
        $region16: #{tpu_custom_call.1} parent=11 // pred_fallthru
          _
      $region12: #{tpu_custom_call.1} parent=5 // pred_fallthru
        _
      %p110 = scmp.lt.s32.totalorder %s13, 2
      // Predicated region
      $region17: #{tpu_custom_call.1} parent=5 // pred_check
        %p111 = pneg %p110
      $region18: #{tpu_custom_call.1} parent=5 // pred_check_branch
        %113 = sbr.rel (%p111) target = $region20
      $region19: #{tpu_custom_call.1} parent=5 // pred_region
        // Predicated region
        $region21: #{tpu_custom_call.1} parent=19 // pred_check
          %p114 = pneg %p33
        $region22: #{tpu_custom_call.1} parent=19 // pred_check_branch
          %116 = sbr.rel (%p114) target = $region24
        $region23: #{tpu_custom_call.1} parent=19 // pred_region
          %s117 = sand.u32 %s23, 1
          %s118 = scalar_lea.sflag [#allocation3], %s117
          %s119 = sand.u32 %s23, 1
          %s120 = smul.addr %s119, 64
          %s121 = scalar_lea.vmem [#allocation2], %s120
          %s122 = smul.u32 4, %s13
          %124 = vsyncadd %s118, 0
          %s125 = smul.addr %s122, 2
          %s126 = smul.addr %s125, 8
          %s127 = scalar_lea.hbm %s0, %s126
          %s128 = sshll.u32 %s127, 4
          %s129 = int_to_ptr.hbm [resolvable:$true] %s128
          %s130 = sshll.u32 %s121, 4
          %s131 = int_to_ptr.vmem [resolvable:$true] %s130
          %136 = dma.hbm_to_vmem [thread:$0]  %s129, 1024, %s131, %s118, 128, 128, 8
        $region24: #{tpu_custom_call.1} parent=19 // pred_fallthru
          _
      $region20: #{tpu_custom_call.1} parent=5 // pred_fallthru
        _
      %p137 = scmp.le.s32.totalorder 1, %s13
      %p138 = scmp.lt.s32.totalorder %s13, 3
      %p139 = pnand %p137, %p138
      %p140 = pneg %p139
      // Predicated region
      $region25: #{tpu_custom_call.1} parent=5 // pred_check
        _
      $region26: #{tpu_custom_call.1} parent=5 // pred_check_branch
        %142 = sbr.rel (%p139) target = $region28
      $region27: #{tpu_custom_call.1} parent=5 // pred_region
        %s143 = ssub.s32 %s13, 1
        %s144 = sand.u32 %s26, 1
        %s145 = scalar_lea.sflag [#allocation3], %s144
        %s146 = sand.u32 %s26, 1
        %s147 = smul.addr %s146, 64
        %s148 = scalar_lea.vmem [#allocation2], %s147
        // Predicated region
        $region29: #{tpu_custom_call.1} parent=27 // pred_check
          %p149 = pneg %p39
        $region30: #{tpu_custom_call.1} parent=27 // pred_check_branch
          %151 = sbr.rel (%p149) target = $region32
        $region31: #{tpu_custom_call.1} parent=27 // pred_region
          %153 = dma.done %s145, 1024
        $region32: #{tpu_custom_call.1} parent=27 // pred_fallthru
          _
        // Predicated region
        $region33: #{tpu_custom_call.1} parent=27 // pred_check
          %p154 = pneg %p60
        $region34: #{tpu_custom_call.1} parent=27 // pred_check_branch
          %156 = sbr.rel (%p154) target = $region36
        $region35: #{tpu_custom_call.1} parent=27 // pred_region
          %158 = dma.done [#allocation6], 256
        $region36: #{tpu_custom_call.1} parent=27 // pred_fallthru
          _
        %s159 = sand.u32 %s26, 1
        %s160 = scalar_lea.sflag [#allocation3], %s159
        %s161 = sand.u32 %s26, 1
        %s162 = smul.addr %s161, 64
        %s163 = scalar_lea.vmem [#allocation2], %s162
        %p164 = pneg %p39
        %p165 = pneg %p36
        %p166 = pneg %p60
        %p167 = pneg %p57
        %p168 = pneg %p81
        %p169 = pneg %p78
        %s170 = smul.u32 4, %s18
        %p172 = scmp.eq.s32.totalorder %s18, 0
        // Predicated region
        $region37: #{tpu_custom_call.1} parent=27 // pred_check
          %p173 = pneg %p172
        $region38: #{tpu_custom_call.1} parent=27 // pred_check_branch
          %175 = sbr.rel (%p173) target = $region40
        $region39: #{tpu_custom_call.1} parent=27 // pred_region
          %vm176 = vcmask 0
          %177 = vst.msk [vmem:[#allocation7] sm:$0x1] %vm176, -inf
        $region40: #{tpu_custom_call.1} parent=27 // pred_fallthru
          _
        %v178 = vld [vmem:[%s148] sm:$0xff]
        %v179 = vld [vmem:[%s148 + $0x8] sm:$0xff]
        %v180 = vld [vmem:[%s148 + $0x10] sm:$0xff]
        %v181 = vld [vmem:[%s148 + $0x18] sm:$0xff]
        %v182 = vld [vmem:[%s148 + $0x20] sm:$0xff]
        %v183 = vld [vmem:[%s148 + $0x28] sm:$0xff]
        %v184 = vld [vmem:[%s148 + $0x30] sm:$0xff]
        %v185 = vld [vmem:[%s148 + $0x38] sm:$0xff]
        %v186 = vpack.c.bf16 %v179, %v178
        %v187 = vpack.c.bf16 %v181, %v180
        %v188 = vpack.c.bf16 %v183, %v182
        %v189 = vpack.c.bf16 %v185, %v184
        %v190 = vld [vmem:[#allocation5] sm:$0xf]
        %v191 = vld [vmem:[#allocation5 + $0x4] sm:$0xf]
        %v192 = vld [vmem:[#allocation5 + $0x8] sm:$0xf]
        %v193 = vld [vmem:[#allocation5 + $0xc] sm:$0xf]
        %v198 = vunpack.c.l.b16 %v190
        %v199 = vunpack.c.l.b16 %v191
        %v200 = vunpack.c.l.b16 %v192
        %v201 = vunpack.c.l.b16 %v193
        %v202 = vpack.c.b16 %v199, %v198
        %v203 = vpack.c.b16 %v201, %v200
        %vm206 = vcmask 261120
        %v208 = vsel %vm206, %v186, 0
        %v211 = vsel %vm206, %v187, 0
        %v214 = vsel %vm206, %v188, 0
        %v217 = vsel %vm206, %v189, 0
        %219 = vmatpush.bf16.msra.mxu0 0
        %220 = vmatpush.bf16.msra.mxu0 0
        %221 = vmatpush.bf16.msra.mxu0 0
        %222 = vmatpush.bf16.msra.mxu0 0
        %223 = vmatpush.bf16.msra.mxu0 0
        %224 = vmatpush.bf16.msra.mxu0 0
        %225 = vmatpush.bf16.msra.mxu0 %v203
        %226 = vmatpush.bf16.msra.mxu0 %v202
        %227 = vmatmul.bf16.gmra.mxu0 %v208
        %v228 = vpop.f32.mrf.mxu0
        %v229 = vadd.f32 0.0, %v228
        %v230 = vpop.f32.mrf.mxu0
        %v231 = vadd.f32 0.0, %v230
        %232 = vmatmul.bf16.gmra.mxu0 %v211
        %v233 = vpop.f32.mrf.mxu0
        %v234 = vadd.f32 0.0, %v233
        %v235 = vpop.f32.mrf.mxu0
        %v236 = vadd.f32 0.0, %v235
        %237 = vmatmul.bf16.gmra.mxu0 %v214
        %v238 = vpop.f32.mrf.mxu0
        %v239 = vadd.f32 0.0, %v238
        %v240 = vpop.f32.mrf.mxu0
        %v241 = vadd.f32 0.0, %v240
        %242 = vmatmul.bf16.gmra.mxu0 %v217
        %v243 = vpop.f32.mrf.mxu0
        %v244 = vadd.f32 0.0, %v243
        %v245 = vpop.f32.mrf.mxu0
        %v246 = vadd.f32 0.0, %v245
        %247 = vdwg.mxu0
        %vm248 = vcmask 900096
        %v249 = vsel %vm248, %v229, -inf
        %250 = vmax.xlane.f32.xlu0 %v249
        %v251 = vpop.xlane.xlu0 %250
        %v252 = vsel %vm248, %v231, -inf
        %253 = vmax.xlane.f32.xlu0 %v252
        %v254 = vpop.xlane.xlu0 %253
        %v255 = vsel %vm248, %v234, -inf
        %256 = vmax.xlane.f32.xlu0 %v255
        %v257 = vpop.xlane.xlu0 %256
        %v258 = vsel %vm248, %v236, -inf
        %259 = vmax.xlane.f32.xlu0 %v258
        %v260 = vpop.xlane.xlu0 %259
        %v261 = vsel %vm248, %v239, -inf
        %262 = vmax.xlane.f32.xlu0 %v261
        %v263 = vpop.xlane.xlu0 %262
        %v264 = vsel %vm248, %v241, -inf
        %265 = vmax.xlane.f32.xlu0 %v264
        %v266 = vpop.xlane.xlu0 %265
        %v267 = vsel %vm248, %v244, -inf
        %268 = vmax.xlane.f32.xlu0 %v267
        %v269 = vpop.xlane.xlu0 %268
        %v270 = vsel %vm248, %v246, -inf
        %271 = vmax.xlane.f32.xlu0 %v270
        %v272 = vpop.xlane.xlu0 %271
        %v273 = vmax.f32 %v251, %v263
        %v274 = vmax.f32 %v254, %v266
        %v275 = vmax.f32 %v257, %v269
        %v276 = vmax.f32 %v260, %v272
        %v277 = vmax.f32 %v273, %v274
        %v278 = vmax.f32 %v275, %v276
        %v279 = vmax.f32 %v277, %v278
        %v280 = vrot.slane %v279, 4
        %v281 = vmax.f32 %v279, %v280
        %v282 = vrot.slane %v281, 2
        %v283 = vmax.f32 %v281, %v282
        %v284 = vrot.slane %v283, 1
        %v285 = vmax.f32 %v283, %v284
        %v286 = vld [vmem:[#allocation7] sm:$0x1]
        %v287 = vmax.f32 %v286, %v285
        %vm288 = vcmask 0
        %289 = vst.msk [vmem:[#allocation7] sm:$0x1] %vm288, %v287
        // Predicated region
        $region41: #{tpu_custom_call.1} parent=27 // pred_check
          %p290 = pneg %p78
        $region42: #{tpu_custom_call.1} parent=27 // pred_check_branch
          %292 = sbr.rel (%p290) target = $region44
        $region43: #{tpu_custom_call.1} parent=27 // pred_region
          %294 = vsyncadd [#allocation4], 0
          %s296 = sshll.u32 [#allocation7], 4
          %s297 = int_to_ptr.vmem [resolvable:$true] %s296
          %s298 = sshll.u32 %s2, 4
          %s299 = int_to_ptr.hbm [resolvable:$true] %s298
          %301 = dma.vmem_to_hbm [thread:$0]  %s297, 16, %s299, [#allocation4]
        $region44: #{tpu_custom_call.1} parent=27 // pred_fallthru
          _
        // Predicated region
        $region45: #{tpu_custom_call.1} parent=27 // pred_check
          %p302 = pneg %p78
        $region46: #{tpu_custom_call.1} parent=27 // pred_check_branch
          %304 = sbr.rel (%p302) target = $region48
        $region47: #{tpu_custom_call.1} parent=27 // pred_region
          %306 = dma.done [#allocation4], 16
        $region48: #{tpu_custom_call.1} parent=27 // pred_fallthru
          _
      $region28: #{tpu_custom_call.1} parent=5 // pred_fallthru
        _
      %p307 = scmp.le.s32.totalorder 2, %s13
      // Predicated region
      $region49: #{tpu_custom_call.1} parent=5 // pred_check
        %p308 = pneg %p307
      $region50: #{tpu_custom_call.1} parent=5 // pred_check_branch
        %310 = sbr.rel (%p308) target = $region52
      $region51: #{tpu_custom_call.1} parent=5 // pred_region
        %s311 = ssub.s32 %s13, 2
      $region52: #{tpu_custom_call.1} parent=5 // pred_fallthru
        _
    $region6: #{tpu_custom_call.1} parent=1 // loop_footer
      %s17 = sadd.s32 1, %s13
    $region7: #{tpu_custom_call.1} parent=1 // loop_footer_branch
      %12 = sbr.rel target = $region3
    $region8: #{tpu_custom_call.1} parent=1 // loop_exit
      _
    %312 = vsyncpa [#allocation3], 1
    %s313 = scalar_lea.sflag [#allocation3], 1
    %314 = vsyncpa %s313, 1
    %315 = vsyncpa [#allocation6], 1
    %316 = vsyncpa [#allocation4], 1
    %s317 = scalar_lea.sflag [#allocation4], 1
    %318 = vsyncpa %s317, 1

</llo_original>
